<compile_context>
chip_gen: v7x
topology: tpu7x:2x2x1
jax: 0.10.0
libtpu: 0.0.40
codegen_flags: <defaults>
</compile_context>

<pallas_src>
import functools

import numpy as np
import jax
import jax.numpy as jnp
from jax.experimental import pallas as pl
from jax.experimental.pallas import tpu as pltpu


def _round_up(x, m):
    return (x + m - 1) // m * m


# ----------------------------------------------------------------------------
# Pallas kernel
# ----------------------------------------------------------------------------
def _recon_loss_kernel(smask_ref,                        # SMEM (B,) int32 (scalar prefetch)
                       x_ref, side_ref, w_ref, b_ref,    # inputs
                       out_ref,                          # output block (8, 128)
                       acc_ref,                          # VMEM (1, 8) f32 accumulator
                       *, cb_pad, weight, null_camera_bin, reduction, eps,
                       t_total, compute_entropy):
    # All pallas index primitives at kernel top level (NOT inside pl.when bodies).
    b = pl.program_id(0)
    t = pl.program_id(1)
    nt = pl.num_programs(1)
    sm = smask_ref[b].astype(jnp.float32)                # per-sample env mask (scalar)

    @pl.when(t == 0)
    def _init():
        acc_ref[...] = jnp.zeros_like(acc_ref)

    # Fused head matmul: (tile_t, H) @ (H, Cb_pad + Cc_pad) on the MXU, f32 acc.
    # Cast to the weight dtype in-kernel (no host-side round trip of latents).
    x = x_ref[...]                                       # (tile_t, H) original dtype
    tile = x.shape[0]
    xm = x.astype(w_ref.dtype)
    logits = jnp.dot(xm, w_ref[...], preferred_element_type=jnp.float32)
    logits = logits + b_ref[...]                         # (tile_t, Ctot) f32

    side = side_ref[...]                                 # (tile_t, 4) f32
    btn = side[:, 0:1].astype(jnp.int32)
    cam = side[:, 1:2].astype(jnp.int32)

    # Tail-tile guard: latents are NOT padded host-side, so rows past T hold
    # garbage (possibly NaN/inf).  Everything row-wise is where-guarded.
    row = jax.lax.broadcasted_iota(jnp.int32, (tile, 1), 0) + t * tile
    valid = row < t_total
    mask = jnp.where(valid, side[:, 2:3], 0.0)           # (tile_t, 1) f32
    cam_mask = (cam != null_camera_bin).astype(jnp.float32)
    mc = mask * cam_mask

    def head(logits_h, act, m_col):
        # Stable log-softmax with a single exp pass.
        mx = jnp.max(logits_h, axis=-1, keepdims=True)
        z = logits_h - mx
        e = jnp.exp(z)                                   # EUP, one pass
        s = jnp.sum(e, axis=-1, keepdims=True)
        log_s = jnp.log(s)
        cols = jax.lax.broadcasted_iota(jnp.int32, z.shape, 1)
        onehot = (cols == act).astype(jnp.float32)
        lp_sel = jnp.sum(z * onehot, axis=-1, keepdims=True) - log_s
        lp_sel = jnp.where(valid, lp_sel, 0.0)           # NaN-safe tail guard
        lp_sum = jnp.sum(lp_sel * m_col, axis=0, keepdims=True)    # (1, 1)
        if compute_entropy:
            # entropy = -sum p*logp = log(s) - sum(e*z)/s   (no second exp)
            ent = log_s - jnp.sum(e * z, axis=-1, keepdims=True) / s
            ent = jnp.where(valid, ent, 0.0)
            ent_sum = jnp.sum(ent * m_col, axis=0, keepdims=True)  # (1, 1)
        else:
            ent_sum = jnp.zeros_like(lp_sum)
        return lp_sum, ent_sum

    lpb_sum, eb_sum = head(logits[:, :cb_pad], btn, mask)
    lpc_sum, ec_sum = head(logits[:, cb_pad:], cam, mc)
    m_sum = jnp.sum(mask, axis=0, keepdims=True)
    mc_sum = jnp.sum(mc, axis=0, keepdims=True)

    # One merged (1,8) accumulator: single RMW per grid step.
    lane8 = jax.lax.broadcasted_iota(jnp.int32, (1, 8), 1)
    upd = (jnp.where(lane8 == 0, lpb_sum, 0.0)
           + jnp.where(lane8 == 1, lpc_sum, 0.0)
           + jnp.where(lane8 == 2, eb_sum, 0.0)
           + jnp.where(lane8 == 3, ec_sum, 0.0)
           + jnp.where(lane8 == 4, m_sum, 0.0)
           + jnp.where(lane8 == 5, mc_sum, 0.0))
    acc_ref[...] += upd

    @pl.when(t == nt - 1)
    def _finalize():
        a = acc_ref[...]                                 # (1, 8)
        lpb, lpc = a[:, 0:1], a[:, 1:2]
        eb, ec = a[:, 2:3], a[:, 3:4]
        m_tot, mc_tot = a[:, 4:5], a[:, 5:6]
        if reduction == 'mean':
            inv_b = 1.0 / (m_tot + eps)
            inv_c = 1.0 / (mc_tot + eps)
            lpb = lpb * inv_b
            eb = eb * inv_b
            lpc = lpc * inv_c
            ec = ec * inv_c
        nll_btn = -lpb * sm
        nll_cam = -lpc * sm
        nll_bc = nll_btn + nll_cam
        ent = (eb + ec) * sm
        loss = weight * nll_bc
        # Pack the 5 per-sample scalars into lanes 0..4 of a lane-dense slab.
        lane = jax.lax.broadcasted_iota(jnp.int32, out_ref.shape, 1)   # (8, 128)
        out = (jnp.where(lane == 0, nll_bc, 0.0)
               + jnp.where(lane == 1, nll_btn, 0.0)
               + jnp.where(lane == 2, nll_cam, 0.0)
               + jnp.where(lane == 3, ent, 0.0)
               + jnp.where(lane == 4, loss, 0.0))
        out_ref[...] = out


def _resident_spec(shape, index_map):
    """BlockSpec for constant-index (never re-fetched) blocks; single-buffered
    when the installed JAX supports pipeline_mode=pl.Buffered(1)."""
    buffered = getattr(pl, "Buffered", None)
    if buffered is not None:
        try:
            return pl.BlockSpec(shape, index_map, pipeline_mode=buffered(1))
        except Exception:  # older/newer API variations: fall back to default buffering
            pass
    return pl.BlockSpec(shape, index_map)


# ----------------------------------------------------------------------------
# Python wrappers (glue only: small-array packing, env-string mask, dict packing)
# ----------------------------------------------------------------------------
def minecraft_recon_head_forward(latents, useful_heads):
    # PyTorch forward() is a dict passthrough with no tensor compute.
    return {'pi_head': useful_heads['pi_head'], 'pi_latent': latents['pi_latent']}


def minecraft_recon_loss(latents, btn_actions, cam_actions, mask, env_list, params,
                         *, alias='minecraft', weight=1.0, reduction='sum',
                         null_camera_bin=60, eps=1e-6, condition_info=None,
                         tile_t=None, compute_dtype=jnp.bfloat16,
                         compute_entropy=True, vmem_limit_bytes=None):
    B, T, H = latents.shape
    wb, bb, wc, bc = params
    Cb = wb.shape[1]
    Cc = wc.shape[1]

    # --- time tiling: tile_t rows per grid step; NO padding of latents ----------
    # VMEM-aware default: keep double-buffered x stream under ~24 MiB so it fits
    # v7x (64 MiB VMEM) and the 32 MiB scoped default.  On v5e/v6e (128 MiB) pass
    # a larger tile_t plus vmem_limit_bytes to amortize per-step overhead further.
    if tile_t is None:
        x_bytes = jnp.dtype(latents.dtype).itemsize
        budget = 24 * 1024 * 1024
        cap = budget // max(2 * H * x_bytes, 1)
        tile_t = int(min(512, cap, _round_up(T, 8)))
        tile_t = max(8, tile_t // 8 * 8)
    assert tile_t % 8 == 0, "tile_t must be a multiple of 8 (sublane alignment)"
    nT = pl.cdiv(T, tile_t)

    if mask is None:
        mask = jnp.ones((B, T), jnp.float32)

    # Small side stream packed into (B, T, 4) f32: [btn, cam, mask, 0].
    side = jnp.stack([btn_actions.astype(jnp.float32),
                      cam_actions.astype(jnp.float32),
                      mask.astype(jnp.float32),
                      jnp.zeros((B, T), jnp.float32)], axis=-1)
    SW = side.shape[-1]

    # Fused, lane-padded head weights: W = [wb | wc], each padded to 128 lanes.
    # Pad biases are -1e30 (finite in f32) so exp underflows to exactly 0.
    Cbp = _round_up(Cb, 128)
    Ccp = _round_up(Cc, 128)
    Ctot = Cbp + Ccp
    bb2 = jnp.asarray(bb, jnp.float32).reshape(1, Cb)
    bc2 = jnp.asarray(bc, jnp.float32).reshape(1, Cc)
    wb_p = jnp.pad(jnp.asarray(wb, jnp.float32), ((0, 0), (0, Cbp - Cb)))
    wc_p = jnp.pad(jnp.asarray(wc, jnp.float32), ((0, 0), (0, Ccp - Cc)))
    bb_p = jnp.pad(bb2, ((0, 0), (0, Cbp - Cb)), constant_values=-1e30)
    bc_p = jnp.pad(bc2, ((0, 0), (0, Ccp - Cc)), constant_values=-1e30)
    W = jnp.concatenate([wb_p, wc_p], axis=1).astype(compute_dtype)    # (H, Ctot)
    bias = jnp.concatenate([bb_p, bc_p], axis=1)                       # (1, Ctot) f32

    # sample_mask = [env == alias for env in obs['env']]   (host-side glue)
    smask = jnp.asarray([1 if e == alias else 0 for e in env_list], dtype=jnp.int32)

    kernel = functools.partial(
        _recon_loss_kernel,
        cb_pad=int(Cbp),
        weight=float(weight),
        null_camera_bin=int(null_camera_bin),
        reduction=reduction,
        eps=float(eps),
        t_total=int(T),
        compute_entropy=bool(compute_entropy),
    )

    grid_spec = pltpu.PrefetchScalarGridSpec(
        num_scalar_prefetch=1,
        grid=(B, nT),
        in_specs=[
            # latents in their original dtype; bf16 cast happens in-kernel.
            pl.BlockSpec((None, tile_t, H), lambda b, t, sm: (b, t, 0)),
            pl.BlockSpec((None, tile_t, SW), lambda b, t, sm: (b, t, 0)),
            _resident_spec((H, Ctot), lambda b, t, sm: (0, 0)),      # fused W (single-buffered)
            _resident_spec((1, Ctot), lambda b, t, sm: (0, 0)),      # fused bias
        ],
        out_specs=pl.BlockSpec((None, 8, 128), lambda b, t, sm: (b, 0, 0)),
        scratch_shapes=[pltpu.VMEM((1, 8), jnp.float32)],
    )

    cp_kwargs = dict(dimension_semantics=("parallel", "arbitrary"))
    if vmem_limit_bytes is not None:
        cp_kwargs["vmem_limit_bytes"] = int(vmem_limit_bytes)

    out = pl.pallas_call(
        kernel,
        grid_spec=grid_spec,
        out_shape=jax.ShapeDtypeStruct((B, 8, 128), jnp.float32),
        compiler_params=pltpu.CompilerParams(**cp_kwargs),
    )(smask, latents, side, W, bias)

    vals = out[:, 0, :]                      # (B, 128), lanes 0..4 used
    nll_bc = vals[:, 0]
    nll_btn = vals[:, 1]
    nll_cam = vals[:, 2]
    ent = vals[:, 3]
    loss = vals[:, 4]

    res = {
        f'({alias}) nll_BC': nll_bc,
        f'({alias}) nll_buttons': nll_btn,
        f'({alias}) nll_camera': nll_cam,
        f'({alias}) recon_weight': float(weight),
        f'({alias}) recon_loss': loss,
        f'({alias}) entropy': ent,
    }
    if condition_info is not None and 'informative' in condition_info:
        info = condition_info['informative'].astype(jnp.float32)
        res[f'({alias}) nll_BC_info'] = info * nll_bc
        res[f'({alias}) nll_BC_video'] = (1.0 - info) * nll_bc
    return res


# ----------------------------------------------------------------------------
# Pure-JAX reference for validation.
# ----------------------------------------------------------------------------
def _reference_loss(latents, btn, cam, mask, smask_vec, params, weight,
                    reduction='sum', null_bin=60, eps=1e-6,
                    matmul_dtype=jnp.float32):
    wb, bb, wc, bc = params
    x = latents.astype(matmul_dtype)
    logits_b = jnp.dot(x, wb.astype(matmul_dtype),
                       preferred_element_type=jnp.float32) + bb.reshape(1, 1, -1)
    logits_c = jnp.dot(x, wc.astype(matmul_dtype),
                       preferred_element_type=jnp.float32) + bc.reshape(1, 1, -1)
    logp_b = jax.nn.log_softmax(logits_b, -1)
    logp_c = jax.nn.log_softmax(logits_c, -1)
    ent_b = -jnp.sum(jnp.exp(logp_b) * logp_b, -1)
    ent_c = -jnp.sum(jnp.exp(logp_c) * logp_c, -1)
    lp_b = jnp.take_along_axis(logp_b, btn[..., None], -1)[..., 0]
    lp_c = jnp.take_along_axis(logp_c, cam[..., None], -1)[..., 0]
    cam_mask = (cam != null_bin).astype(jnp.float32)
    logp_buttons = jnp.sum(lp_b * mask, -1)
    logp_camera = jnp.sum(lp_c * mask * cam_mask, -1)
    e_b = jnp.sum(ent_b * mask, -1)
    e_c = jnp.sum(ent_c * mask * cam_mask, -1)
    if reduction == 'mean':
        logp_buttons = logp_buttons / (jnp.sum(mask, -1) + eps)
        logp_camera = logp_camera / (jnp.sum(mask * cam_mask, -1) + eps)
        e_b = e_b / (jnp.sum(mask, -1) + eps)
        e_c = e_c / (jnp.sum(mask * cam_mask, -1) + eps)
    nll_bc = -(logp_buttons + logp_camera) * smask_vec
    return {
        'nll_BC': nll_bc,
        'nll_buttons': -logp_buttons * smask_vec,
        'nll_camera': -logp_camera * smask_vec,
        'entropy': (e_b + e_c) * smask_vec,
        'recon_loss': weight * nll_bc,
    }


def _check(res, ref, alias, rtol, atol):
    np.testing.assert_allclose(np.asarray(res[f'({alias}) nll_BC']),
                               np.asarray(ref['nll_BC']), rtol=rtol, atol=atol)
    np.testing.assert_allclose(np.asarray(res[f'({alias}) nll_buttons']),
                               np.asarray(ref['nll_buttons']), rtol=rtol, atol=atol)
    np.testing.assert_allclose(np.asarray(res[f'({alias}) nll_camera']),
                               np.asarray(ref['nll_camera']), rtol=rtol, atol=atol)
    np.testing.assert_allclose(np.asarray(res[f'({alias}) entropy']),
                               np.asarray(ref['entropy']), rtol=rtol, atol=atol)
    np.testing.assert_allclose(np.asarray(res[f'({alias}) recon_loss']),
                               np.asarray(ref['recon_loss']), rtol=rtol, atol=atol)


if __name__ == "__main__":
    key = jax.random.PRNGKey(0)
    B, T, H = 2, 24, 32          # batch, sequence, pi_latent hidden dim
    Cb, Cc = 128, 121            # buttons classes, camera classes (bin 60 = null)
    alias = 'minecraft'
    TILE_T = 16                  # T=24 -> 2 tiles; tail tile exercises in-kernel masking

    k1, k2, k3, k4, k5, k6, k7, k8 = jax.random.split(key, 8)
    latents = jax.random.normal(k1, (B, T, H), jnp.float32)
    wb = jax.random.normal(k2, (H, Cb), jnp.float32) * 0.05
    bb = jax.random.normal(k3, (1, Cb), jnp.float32) * 0.01
    wc = jax.random.normal(k4, (H, Cc), jnp.float32) * 0.05
    bc = jax.random.normal(k5, (1, Cc), jnp.float32) * 0.01
    params = (wb, bb, wc, bc)

    btn = jax.random.randint(k6, (B, T), 0, Cb, dtype=jnp.int32)
    cam = jax.random.randint(k7, (B, T), 0, Cc, dtype=jnp.int32)
    cam = cam.at[0, 0].set(60).at[1, 3].set(60)        # exercise the null-camera mask
    mask = (jax.random.uniform(k8, (B, T)) > 0.2).astype(jnp.float32)
    envs = ['minecraft', 'other_env']                  # second sample is masked out
    smask_vec = jnp.asarray([1.0 if e == alias else 0.0 for e in envs], jnp.float32)

    # forward() passthrough (no compute)
    fwd = minecraft_recon_head_forward({'pi_latent': latents}, {'pi_head': params})

    # --- f32 path, reduction='sum': tight check against pure-JAX reference ---
    res_f32 = minecraft_recon_loss(fwd['pi_latent'], btn, cam, mask, envs, fwd['pi_head'],
                                   alias=alias, weight=1.0, reduction='sum',
                                   tile_t=TILE_T, compute_dtype=jnp.float32)
    jax.block_until_ready({k: v for k, v in res_f32.items() if isinstance(v, jax.Array)})
    ref_sum = _reference_loss(latents, btn, cam, mask, smask_vec, params, 1.0, 'sum')
    _check(res_f32, ref_sum, alias, rtol=1e-4, atol=1e-4)

    # --- f32 path, reduction='mean' ---
    res_mean = minecraft_recon_loss(fwd['pi_latent'], btn, cam, mask, envs, fwd['pi_head'],
                                    alias=alias, weight=1.0, reduction='mean',
                                    tile_t=TILE_T, compute_dtype=jnp.float32)
    jax.block_until_ready({k: v for k, v in res_mean.items() if isinstance(v, jax.Array)})
    ref_mean = _reference_loss(latents, btn, cam, mask, smask_vec, params, 1.0, 'mean')
    _check(res_mean, ref_mean, alias, rtol=1e-4, atol=1e-4)

    # --- bf16 MXU path (production default): loose check against f32 reference ---
    res_bf16 = minecraft_recon_loss(fwd['pi_latent'], btn, cam, mask, envs, fwd['pi_head'],
                                    alias=alias, weight=1.0, reduction='sum',
                                    tile_t=TILE_T, compute_dtype=jnp.bfloat16)
    jax.block_until_ready({k: v for k, v in res_bf16.items() if isinstance(v, jax.Array)})
    _check(res_bf16, ref_sum, alias, rtol=1e-2, atol=1e-2)

    print("KERNEL_OK")
</pallas_src>

<mosaic_0001>
module attributes {stable_mosaic.version = 11 : i64} {
  func.func @_recon_loss_kernel(%arg0: i32, %arg1: i32, %arg2: memref<2xi32, #tpu.memory_space<smem>>, %arg3: memref<1x16x32xf32, #tpu.memory_space<vmem>>, %arg4: memref<1x16x4xf32, #tpu.memory_space<vmem>>, %arg5: memref<32x256xf32, #tpu.memory_space<vmem>>, %arg6: memref<1x256xf32, #tpu.memory_space<vmem>>, %arg7: memref<1x8x128xf32, #tpu.memory_space<vmem>>, %arg8: memref<1x8xf32, #tpu.memory_space<vmem>>) attributes {dimension_semantics = [#tpu.dimension_semantics<parallel>, #tpu.dimension_semantics<arbitrary>], iteration_bounds = array<i64: 2, 2>, scalar_prefetch = 1 : i64, scratch_operands = 1 : i64, tpu.core_type = #tpu.core_type<tc>, window_params = [{transform_indices = @transform_0, window_bounds = array<i64: 1, 16, 32>}, {transform_indices = @transform_1, window_bounds = array<i64: 1, 16, 4>}, {pipeline_mode = #tpu.pipeline_mode<synchronous>, transform_indices = @transform_2, window_bounds = array<i64: 32, 256>}, {pipeline_mode = #tpu.pipeline_mode<synchronous>, transform_indices = @transform_3, window_bounds = array<i64: 1, 256>}, {transform_indices = @transform_4, window_bounds = array<i64: 1, 8, 128>}]} {
    %0 = arith.index_cast %arg0 : i32 to index
    %1 = memref.load %arg2[%0] : memref<2xi32, #tpu.memory_space<smem>>
    %2 = arith.sitofp %1 : i32 to f32
    %c0_i32 = arith.constant 0 : i32
    %3 = arith.cmpi eq, %arg1, %c0_i32 : i32
    %4 = arith.extui %3 : i1 to i32
    %c0_i32_0 = arith.constant 0 : i32
    %5 = arith.cmpi ne, %4, %c0_i32_0 : i32
    scf.if %5 {
      %cst_42 = arith.constant 0.000000e+00 : f32
      %151 = vector.broadcast %cst_42 : f32 to vector<1x8xf32>
      %c0_43 = arith.constant 0 : index
      %c0_44 = arith.constant 0 : index
      %152 = vector.load %arg8[%c0_43, %c0_44] : memref<1x8xf32, #tpu.memory_space<vmem>>, vector<1x8xf32>
      tpu.vector_store %arg8[%c0_43, %c0_44], %151 {strides = array<i32>} : memref<1x8xf32, #tpu.memory_space<vmem>>, vector<1x8xf32>,
    } else {
    }
    %c0 = arith.constant 0 : index
    %c0_1 = arith.constant 0 : index
    %c0_2 = arith.constant 0 : index
    %6 = vector.load %arg3[%c0, %c0_1, %c0_2] : memref<1x16x32xf32, #tpu.memory_space<vmem>>, vector<1x16x32xf32>
    %7 = vector.shape_cast %6 : vector<1x16x32xf32> to vector<16x32xf32>
    %c0_3 = arith.constant 0 : index
    %c0_4 = arith.constant 0 : index
    %8 = vector.load %arg5[%c0_3, %c0_4] : memref<32x256xf32, #tpu.memory_space<vmem>>, vector<32x256xf32>
    %cst = arith.constant dense<0.000000e+00> : vector<16x256xf32>
    %9 = tpu.matmul %7, %8, %cst {dimension_numbers = #tpu.dot_dimension_numbers<[1], [0], [0], [1], [0, 0, 1, 1], [], []>} : vector<16x32xf32>, vector<32x256xf32>, vector<16x256xf32> -> vector<16x256xf32>
    %c0_5 = arith.constant 0 : index
    %c0_6 = arith.constant 0 : index
    %10 = vector.load %arg6[%c0_5, %c0_6] : memref<1x256xf32, #tpu.memory_space<vmem>>, vector<1x256xf32>
    %11 = vector.broadcast %10 : vector<1x256xf32> to vector<16x256xf32>
    %12 = arith.addf %9, %11 : vector<16x256xf32>
    %c0_7 = arith.constant 0 : index
    %c0_8 = arith.constant 0 : index
    %c0_9 = arith.constant 0 : index
    %13 = vector.load %arg4[%c0_7, %c0_8, %c0_9] : memref<1x16x4xf32, #tpu.memory_space<vmem>>, vector<1x16x4xf32>
    %14 = vector.shape_cast %13 : vector<1x16x4xf32> to vector<16x4xf32>
    %15 = vector.extract_strided_slice %14 {offsets = [0, 0], sizes = [16, 1], strides = [1, 1]} : vector<16x4xf32> to vector<16x1xf32>
    %16 = arith.fptosi %15 : vector<16x1xf32> to vector<16x1xi32>
    %17 = vector.extract_strided_slice %14 {offsets = [0, 1], sizes = [16, 1], strides = [1, 1]} : vector<16x4xf32> to vector<16x1xf32>
    %18 = arith.fptosi %17 : vector<16x1xf32> to vector<16x1xi32>
    %19 = tpu.iota {dimensions = array<i32: 0>} : vector<16x1xi32>
    %c16_i32 = arith.constant 16 : i32
    %20 = arith.muli %arg1, %c16_i32 : i32
    %21 = vector.broadcast %20 : i32 to vector<16x1xi32>
    %22 = arith.addi %19, %21 : vector<16x1xi32>
    %c24_i32 = arith.constant 24 : i32
    %23 = vector.broadcast %c24_i32 : i32 to vector<16x1xi32>
    %24 = arith.cmpi slt, %22, %23 : vector<16x1xi32>
    %25 = vector.extract_strided_slice %14 {offsets = [0, 2], sizes = [16, 1], strides = [1, 1]} : vector<16x4xf32> to vector<16x1xf32>
    %cst_10 = arith.constant 0.000000e+00 : f32
    %26 = vector.broadcast %cst_10 : f32 to vector<16x1xf32>
    %27 = arith.select %24, %25, %26 : vector<16x1xi1>, vector<16x1xf32>
    %c60_i32 = arith.constant 60 : i32
    %28 = vector.broadcast %c60_i32 : i32 to vector<16x1xi32>
    %29 = arith.cmpi ne, %18, %28 : vector<16x1xi32>
    %30 = arith.extui %29 : vector<16x1xi1> to vector<16x1xi32>
    %31 = arith.sitofp %30 : vector<16x1xi32> to vector<16x1xf32>
    %32 = arith.mulf %27, %31 : vector<16x1xf32>
    %33 = vector.extract_strided_slice %12 {offsets = [0, 0], sizes = [16, 128], strides = [1, 1]} : vector<16x256xf32> to vector<16x128xf32>
    %cst_11 = arith.constant dense<0xFF800000> : vector<16xf32>
    %34 = vector.multi_reduction <maximumf>, %33, %cst_11 [1] : vector<16x128xf32> to vector<16xf32>
    %35 = vector.shape_cast %34 : vector<16xf32> to vector<16x1xf32>
    %36 = vector.broadcast %35 : vector<16x1xf32> to vector<16x128xf32>
    %37 = arith.subf %33, %36 : vector<16x128xf32>
    %38 = math.exp %37 : vector<16x128xf32>
    %cst_12 = arith.constant dense<0.000000e+00> : vector<16xf32>
    %39 = vector.multi_reduction <add>, %38, %cst_12 [1] : vector<16x128xf32> to vector<16xf32>
    %40 = vector.shape_cast %39 : vector<16xf32> to vector<16x1xf32>
    %41 = math.log %40 : vector<16x1xf32>
    %42 = tpu.iota {dimensions = array<i32: 1>} : vector<16x128xi32>
    %43 = vector.broadcast %16 : vector<16x1xi32> to vector<16x128xi32>
    %44 = arith.cmpi eq, %42, %43 : vector<16x128xi32>
    %45 = arith.extui %44 : vector<16x128xi1> to vector<16x128xi32>
    %46 = arith.sitofp %45 : vector<16x128xi32> to vector<16x128xf32>
    %47 = arith.mulf %37, %46 : vector<16x128xf32>
    %cst_13 = arith.constant dense<0.000000e+00> : vector<16xf32>
    %48 = vector.multi_reduction <add>, %47, %cst_13 [1] : vector<16x128xf32> to vector<16xf32>
    %49 = vector.shape_cast %48 : vector<16xf32> to vector<16x1xf32>
    %50 = arith.subf %49, %41 : vector<16x1xf32>
    %cst_14 = arith.constant 0.000000e+00 : f32
    %51 = vector.broadcast %cst_14 : f32 to vector<16x1xf32>
    %52 = arith.select %24, %50, %51 : vector<16x1xi1>, vector<16x1xf32>
    %53 = arith.mulf %52, %27 : vector<16x1xf32>
    %cst_15 = arith.constant dense<0.000000e+00> : vector<1xf32>
    %54 = vector.multi_reduction <add>, %53, %cst_15 [0] : vector<16x1xf32> to vector<1xf32>
    %55 = vector.shape_cast %54 : vector<1xf32> to vector<1x1xf32>
    %56 = arith.mulf %38, %37 : vector<16x128xf32>
    %cst_16 = arith.constant dense<0.000000e+00> : vector<16xf32>
    %57 = vector.multi_reduction <add>, %56, %cst_16 [1] : vector<16x128xf32> to vector<16xf32>
    %58 = vector.shape_cast %57 : vector<16xf32> to vector<16x1xf32>
    %59 = arith.divf %58, %40 : vector<16x1xf32>
    %60 = arith.subf %41, %59 : vector<16x1xf32>
    %cst_17 = arith.constant 0.000000e+00 : f32
    %61 = vector.broadcast %cst_17 : f32 to vector<16x1xf32>
    %62 = arith.select %24, %60, %61 : vector<16x1xi1>, vector<16x1xf32>
    %63 = arith.mulf %62, %27 : vector<16x1xf32>
    %cst_18 = arith.constant dense<0.000000e+00> : vector<1xf32>
    %64 = vector.multi_reduction <add>, %63, %cst_18 [0] : vector<16x1xf32> to vector<1xf32>
    %65 = vector.shape_cast %64 : vector<1xf32> to vector<1x1xf32>
    %66 = vector.extract_strided_slice %12 {offsets = [0, 128], sizes = [16, 128], strides = [1, 1]} : vector<16x256xf32> to vector<16x128xf32>
    %cst_19 = arith.constant dense<0xFF800000> : vector<16xf32>
    %67 = vector.multi_reduction <maximumf>, %66, %cst_19 [1] : vector<16x128xf32> to vector<16xf32>
    %68 = vector.shape_cast %67 : vector<16xf32> to vector<16x1xf32>
    %69 = vector.broadcast %68 : vector<16x1xf32> to vector<16x128xf32>
    %70 = arith.subf %66, %69 : vector<16x128xf32>
    %71 = math.exp %70 : vector<16x128xf32>
    %cst_20 = arith.constant dense<0.000000e+00> : vector<16xf32>
    %72 = vector.multi_reduction <add>, %71, %cst_20 [1] : vector<16x128xf32> to vector<16xf32>
    %73 = vector.shape_cast %72 : vector<16xf32> to vector<16x1xf32>
    %74 = math.log %73 : vector<16x1xf32>
    %75 = tpu.iota {dimensions = array<i32: 1>} : vector<16x128xi32>
    %76 = vector.broadcast %18 : vector<16x1xi32> to vector<16x128xi32>
    %77 = arith.cmpi eq, %75, %76 : vector<16x128xi32>
    %78 = arith.extui %77 : vector<16x128xi1> to vector<16x128xi32>
    %79 = arith.sitofp %78 : vector<16x128xi32> to vector<16x128xf32>
    %80 = arith.mulf %70, %79 : vector<16x128xf32>
    %cst_21 = arith.constant dense<0.000000e+00> : vector<16xf32>
    %81 = vector.multi_reduction <add>, %80, %cst_21 [1] : vector<16x128xf32> to vector<16xf32>
    %82 = vector.shape_cast %81 : vector<16xf32> to vector<16x1xf32>
    %83 = arith.subf %82, %74 : vector<16x1xf32>
    %cst_22 = arith.constant 0.000000e+00 : f32
    %84 = vector.broadcast %cst_22 : f32 to vector<16x1xf32>
    %85 = arith.select %24, %83, %84 : vector<16x1xi1>, vector<16x1xf32>
    %86 = arith.mulf %85, %32 : vector<16x1xf32>
    %cst_23 = arith.constant dense<0.000000e+00> : vector<1xf32>
    %87 = vector.multi_reduction <add>, %86, %cst_23 [0] : vector<16x1xf32> to vector<1xf32>
    %88 = vector.shape_cast %87 : vector<1xf32> to vector<1x1xf32>
    %89 = arith.mulf %71, %70 : vector<16x128xf32>
    %cst_24 = arith.constant dense<0.000000e+00> : vector<16xf32>
    %90 = vector.multi_reduction <add>, %89, %cst_24 [1] : vector<16x128xf32> to vector<16xf32>
    %91 = vector.shape_cast %90 : vector<16xf32> to vector<16x1xf32>
    %92 = arith.divf %91, %73 : vector<16x1xf32>
    %93 = arith.subf %74, %92 : vector<16x1xf32>
    %cst_25 = arith.constant 0.000000e+00 : f32
    %94 = vector.broadcast %cst_25 : f32 to vector<16x1xf32>
    %95 = arith.select %24, %93, %94 : vector<16x1xi1>, vector<16x1xf32>
    %96 = arith.mulf %95, %32 : vector<16x1xf32>
    %cst_26 = arith.constant dense<0.000000e+00> : vector<1xf32>
    %97 = vector.multi_reduction <add>, %96, %cst_26 [0] : vector<16x1xf32> to vector<1xf32>
    %98 = vector.shape_cast %97 : vector<1xf32> to vector<1x1xf32>
    %cst_27 = arith.constant dense<0.000000e+00> : vector<1xf32>
    %99 = vector.multi_reduction <add>, %27, %cst_27 [0] : vector<16x1xf32> to vector<1xf32>
    %100 = vector.shape_cast %99 : vector<1xf32> to vector<1x1xf32>
    %cst_28 = arith.constant dense<0.000000e+00> : vector<1xf32>
    %101 = vector.multi_reduction <add>, %32, %cst_28 [0] : vector<16x1xf32> to vector<1xf32>
    %102 = vector.shape_cast %101 : vector<1xf32> to vector<1x1xf32>
    %103 = tpu.iota {dimensions = array<i32: 1>} : vector<1x8xi32>
    %c0_i32_29 = arith.constant 0 : i32
    %104 = vector.broadcast %c0_i32_29 : i32 to vector<1x8xi32>
    %105 = arith.cmpi eq, %103, %104 : vector<1x8xi32>
    %cst_30 = arith.constant 0.000000e+00 : f32
    %106 = vector.shape_cast %55 : vector<1x1xf32> to vector<1x1xf32>
    %107 = vector.broadcast %106 : vector<1x1xf32> to vector<1x8xf32>
    %108 = vector.broadcast %cst_30 : f32 to vector<1x8xf32>
    %109 = arith.select %105, %107, %108 : vector<1x8xi1>, vector<1x8xf32>
    %c1_i32 = arith.constant 1 : i32
    %110 = vector.broadcast %c1_i32 : i32 to vector<1x8xi32>
    %111 = arith.cmpi eq, %103, %110 : vector<1x8xi32>
    %cst_31 = arith.constant 0.000000e+00 : f32
    %112 = vector.shape_cast %88 : vector<1x1xf32> to vector<1x1xf32>
    %113 = vector.broadcast %112 : vector<1x1xf32> to vector<1x8xf32>
    %114 = vector.broadcast %cst_31 : f32 to vector<1x8xf32>
    %115 = arith.select %111, %113, %114 : vector<1x8xi1>, vector<1x8xf32>
    %116 = arith.addf %109, %115 : vector<1x8xf32>
    %c2_i32 = arith.constant 2 : i32
    %117 = vector.broadcast %c2_i32 : i32 to vector<1x8xi32>
    %118 = arith.cmpi eq, %103, %117 : vector<1x8xi32>
    %cst_32 = arith.constant 0.000000e+00 : f32
    %119 = vector.shape_cast %65 : vector<1x1xf32> to vector<1x1xf32>
    %120 = vector.broadcast %119 : vector<1x1xf32> to vector<1x8xf32>
    %121 = vector.broadcast %cst_32 : f32 to vector<1x8xf32>
    %122 = arith.select %118, %120, %121 : vector<1x8xi1>, vector<1x8xf32>
    %123 = arith.addf %116, %122 : vector<1x8xf32>
    %c3_i32 = arith.constant 3 : i32
    %124 = vector.broadcast %c3_i32 : i32 to vector<1x8xi32>
    %125 = arith.cmpi eq, %103, %124 : vector<1x8xi32>
    %cst_33 = arith.constant 0.000000e+00 : f32
    %126 = vector.shape_cast %98 : vector<1x1xf32> to vector<1x1xf32>
    %127 = vector.broadcast %126 : vector<1x1xf32> to vector<1x8xf32>
    %128 = vector.broadcast %cst_33 : f32 to vector<1x8xf32>
    %129 = arith.select %125, %127, %128 : vector<1x8xi1>, vector<1x8xf32>
    %130 = arith.addf %123, %129 : vector<1x8xf32>
    %c4_i32 = arith.constant 4 : i32
    %131 = vector.broadcast %c4_i32 : i32 to vector<1x8xi32>
    %132 = arith.cmpi eq, %103, %131 : vector<1x8xi32>
    %cst_34 = arith.constant 0.000000e+00 : f32
    %133 = vector.shape_cast %100 : vector<1x1xf32> to vector<1x1xf32>
    %134 = vector.broadcast %133 : vector<1x1xf32> to vector<1x8xf32>
    %135 = vector.broadcast %cst_34 : f32 to vector<1x8xf32>
    %136 = arith.select %132, %134, %135 : vector<1x8xi1>, vector<1x8xf32>
    %137 = arith.addf %130, %136 : vector<1x8xf32>
    %c5_i32 = arith.constant 5 : i32
    %138 = vector.broadcast %c5_i32 : i32 to vector<1x8xi32>
    %139 = arith.cmpi eq, %103, %138 : vector<1x8xi32>
    %cst_35 = arith.constant 0.000000e+00 : f32
    %140 = vector.shape_cast %102 : vector<1x1xf32> to vector<1x1xf32>
    %141 = vector.broadcast %140 : vector<1x1xf32> to vector<1x8xf32>
    %142 = vector.broadcast %cst_35 : f32 to vector<1x8xf32>
    %143 = arith.select %139, %141, %142 : vector<1x8xi1>, vector<1x8xf32>
    %144 = arith.addf %137, %143 : vector<1x8xf32>
    %c0_36 = arith.constant 0 : index
    %c0_37 = arith.constant 0 : index
    %145 = vector.load %arg8[%c0_36, %c0_37] : memref<1x8xf32, #tpu.memory_space<vmem>>, vector<1x8xf32>
    %146 = arith.addf %145, %144 : vector<1x8xf32>
    %c0_38 = arith.constant 0 : index
    %c0_39 = arith.constant 0 : index
    %147 = vector.load %arg8[%c0_38, %c0_39] : memref<1x8xf32, #tpu.memory_space<vmem>>, vector<1x8xf32>
    tpu.vector_store %arg8[%c0_38, %c0_39], %146 {strides = array<i32>} : memref<1x8xf32, #tpu.memory_space<vmem>>, vector<1x8xf32>,
    %c1_i32_40 = arith.constant 1 : i32
    %148 = arith.cmpi eq, %arg1, %c1_i32_40 : i32
    %149 = arith.extui %148 : i1 to i32
    %c0_i32_41 = arith.constant 0 : i32
    %150 = arith.cmpi ne, %149, %c0_i32_41 : i32
    scf.if %150 {
      %c0_42 = arith.constant 0 : index
      %c0_43 = arith.constant 0 : index
      %151 = vector.load %arg8[%c0_42, %c0_43] : memref<1x8xf32, #tpu.memory_space<vmem>>, vector<1x8xf32>
      %152 = vector.extract_strided_slice %151 {offsets = [0, 0], sizes = [1, 1], strides = [1, 1]} : vector<1x8xf32> to vector<1x1xf32>
      %153 = vector.extract_strided_slice %151 {offsets = [0, 1], sizes = [1, 1], strides = [1, 1]} : vector<1x8xf32> to vector<1x1xf32>
      %154 = vector.extract_strided_slice %151 {offsets = [0, 2], sizes = [1, 1], strides = [1, 1]} : vector<1x8xf32> to vector<1x1xf32>
      %155 = vector.extract_strided_slice %151 {offsets = [0, 3], sizes = [1, 1], strides = [1, 1]} : vector<1x8xf32> to vector<1x1xf32>
      %cst_44 = arith.constant 0.000000e+00 : f32
      %156 = vector.broadcast %cst_44 : f32 to vector<1x1xf32>
      %157 = arith.subf %156, %152 : vector<1x1xf32>
      %158 = vector.broadcast %2 : f32 to vector<1x1xf32>
      %159 = arith.mulf %157, %158 : vector<1x1xf32>
      %cst_45 = arith.constant 0.000000e+00 : f32
      %160 = vector.broadcast %cst_45 : f32 to vector<1x1xf32>
      %161 = arith.subf %160, %153 : vector<1x1xf32>
      %162 = vector.broadcast %2 : f32 to vector<1x1xf32>
      %163 = arith.mulf %161, %162 : vector<1x1xf32>
      %164 = arith.addf %159, %163 : vector<1x1xf32>
      %165 = arith.addf %154, %155 : vector<1x1xf32>
      %166 = vector.broadcast %2 : f32 to vector<1x1xf32>
      %167 = arith.mulf %165, %166 : vector<1x1xf32>
      %cst_46 = arith.constant 1.000000e+00 : f32
      %168 = vector.broadcast %cst_46 : f32 to vector<1x1xf32>
      %169 = arith.mulf %168, %164 : vector<1x1xf32>
      %170 = tpu.iota {dimensions = array<i32: 1>} : vector<8x128xi32>
      %c0_i32_47 = arith.constant 0 : i32
      %171 = vector.broadcast %c0_i32_47 : i32 to vector<8x128xi32>
      %172 = arith.cmpi eq, %170, %171 : vector<8x128xi32>
      %cst_48 = arith.constant 0.000000e+00 : f32
      %173 = vector.shape_cast %164 : vector<1x1xf32> to vector<1x1xf32>
      %174 = vector.broadcast %173 : vector<1x1xf32> to vector<8x128xf32>
      %175 = vector.broadcast %cst_48 : f32 to vector<8x128xf32>
      %176 = arith.select %172, %174, %175 : vector<8x128xi1>, vector<8x128xf32>
      %c1_i32_49 = arith.constant 1 : i32
      %177 = vector.broadcast %c1_i32_49 : i32 to vector<8x128xi32>
      %178 = arith.cmpi eq, %170, %177 : vector<8x128xi32>
      %cst_50 = arith.constant 0.000000e+00 : f32
      %179 = vector.shape_cast %159 : vector<1x1xf32> to vector<1x1xf32>
      %180 = vector.broadcast %179 : vector<1x1xf32> to vector<8x128xf32>
      %181 = vector.broadcast %cst_50 : f32 to vector<8x128xf32>
      %182 = arith.select %178, %180, %181 : vector<8x128xi1>, vector<8x128xf32>
      %183 = arith.addf %176, %182 : vector<8x128xf32>
      %c2_i32_51 = arith.constant 2 : i32
      %184 = vector.broadcast %c2_i32_51 : i32 to vector<8x128xi32>
      %185 = arith.cmpi eq, %170, %184 : vector<8x128xi32>
      %cst_52 = arith.constant 0.000000e+00 : f32
      %186 = vector.shape_cast %163 : vector<1x1xf32> to vector<1x1xf32>
      %187 = vector.broadcast %186 : vector<1x1xf32> to vector<8x128xf32>
      %188 = vector.broadcast %cst_52 : f32 to vector<8x128xf32>
      %189 = arith.select %185, %187, %188 : vector<8x128xi1>, vector<8x128xf32>
      %190 = arith.addf %183, %189 : vector<8x128xf32>
      %c3_i32_53 = arith.constant 3 : i32
      %191 = vector.broadcast %c3_i32_53 : i32 to vector<8x128xi32>
      %192 = arith.cmpi eq, %170, %191 : vector<8x128xi32>
      %cst_54 = arith.constant 0.000000e+00 : f32
      %193 = vector.shape_cast %167 : vector<1x1xf32> to vector<1x1xf32>
      %194 = vector.broadcast %193 : vector<1x1xf32> to vector<8x128xf32>
      %195 = vector.broadcast %cst_54 : f32 to vector<8x128xf32>
      %196 = arith.select %192, %194, %195 : vector<8x128xi1>, vector<8x128xf32>
      %197 = arith.addf %190, %196 : vector<8x128xf32>
      %c4_i32_55 = arith.constant 4 : i32
      %198 = vector.broadcast %c4_i32_55 : i32 to vector<8x128xi32>
      %199 = arith.cmpi eq, %170, %198 : vector<8x128xi32>
      %cst_56 = arith.constant 0.000000e+00 : f32
      %200 = vector.shape_cast %169 : vector<1x1xf32> to vector<1x1xf32>
      %201 = vector.broadcast %200 : vector<1x1xf32> to vector<8x128xf32>
      %202 = vector.broadcast %cst_56 : f32 to vector<8x128xf32>
      %203 = arith.select %199, %201, %202 : vector<8x128xi1>, vector<8x128xf32>
      %204 = arith.addf %197, %203 : vector<8x128xf32>
      %c0_57 = arith.constant 0 : index
      %c0_58 = arith.constant 0 : index
      %c0_59 = arith.constant 0 : index
      %205 = vector.load %arg7[%c0_57, %c0_58, %c0_59] : memref<1x8x128xf32, #tpu.memory_space<vmem>>, vector<1x8x128xf32>
      %206 = vector.shape_cast %205 : vector<1x8x128xf32> to vector<8x128xf32>
      %207 = vector.shape_cast %204 : vector<8x128xf32> to vector<1x8x128xf32>
      tpu.vector_store %arg7[%c0_57, %c0_58, %c0_59], %207 {strides = array<i32>} : memref<1x8x128xf32, #tpu.memory_space<vmem>>, vector<1x8x128xf32>,
    } else {
    }
    return
  }
  func.func @transform_0(%arg0: i32, %arg1: i32, %arg2: memref<2xi32, #tpu.memory_space<smem>>) -> (i32, i32, i32) {
    %c0_i32 = arith.constant 0 : i32
    %c0_i32_0 = arith.constant 0 : i32
    return %arg0, %arg1, %c0_i32 : i32, i32, i32
  }
  func.func @transform_1(%arg0: i32, %arg1: i32, %arg2: memref<2xi32, #tpu.memory_space<smem>>) -> (i32, i32, i32) {
    %c0_i32 = arith.constant 0 : i32
    %c0_i32_0 = arith.constant 0 : i32
    return %arg0, %arg1, %c0_i32 : i32, i32, i32
  }
  func.func @transform_2(%arg0: i32, %arg1: i32, %arg2: memref<2xi32, #tpu.memory_space<smem>>) -> (i32, i32) {
    %c0_i32 = arith.constant 0 : i32
    %c0_i32_0 = arith.constant 0 : i32
    %c0_i32_1 = arith.constant 0 : i32
    return %c0_i32, %c0_i32_0 : i32, i32
  }
  func.func @transform_3(%arg0: i32, %arg1: i32, %arg2: memref<2xi32, #tpu.memory_space<smem>>) -> (i32, i32) {
    %c0_i32 = arith.constant 0 : i32
    %c0_i32_0 = arith.constant 0 : i32
    %c0_i32_1 = arith.constant 0 : i32
    return %c0_i32, %c0_i32_0 : i32, i32
  }
  func.func @transform_4(%arg0: i32, %arg1: i32, %arg2: memref<2xi32, #tpu.memory_space<smem>>) -> (i32, i32, i32) {
    %c0_i32 = arith.constant 0 : i32
    %c0_i32_0 = arith.constant 0 : i32
    %c0_i32_1 = arith.constant 0 : i32
    return %arg0, %c0_i32, %c0_i32_0 : i32, i32, i32
  }
}

</mosaic_0001>

<llo_original>
// kernel: tpu_custom_call.1
$region0: #{tpu_custom_call.1}
  #allocation0 [shape = 'u32[]', space=smem, size = 0x4, offset = 0x4, fixed_abs, tag = 'smem constant byte address 0x4 - core index']
  #allocation1 [shape = 'u32[144,128]{1,0:T(1,128)}', space=vmem, size = 0x12000, scoped, tag = 'internal scratch']
  #allocation2 [shape = 'f32[1,8]{1,0:T(1,128)}', space=vmem, size = 0x200, scoped, tag = 'scratch operand']
  #allocation3 [shape = 's32[1]{0}', space=sflag, size = 0x4, scoped, tag = 'scoped memory for tpu_custom_call.1']
  #allocation4 [shape = 'u8[512]{0}', space=smem, size = 0x200, scoped, tag = 'prefetched SMEM operand 0']
  %s0 = inlined_call_operand.vmem [shape: s32[2], index: 0, kind: input, shape index: {}]
  %s1 = inlined_call_operand.hbm [shape: f32[2,24,32], index: 1, kind: input, shape index: {}]
  %s2 = inlined_call_operand.vmem [shape: f32[2,24,4], index: 2, kind: input, shape index: {}]
  %s3 = inlined_call_operand.vmem [shape: f32[32,256], index: 3, kind: input, shape index: {}]
  %s4 = inlined_call_operand.vmem [shape: f32[1,256], index: 4, kind: input, shape index: {}]
  %s5 = inlined_call_operand.hbm [shape: f32[2,8,128], index: 5, kind: output, shape index: {}]
  %s6 = sld [smem:[#allocation0]]
  $region61: #{tpu_custom_call.1} parent=0
    _
  %s8 = ssub.s32 1, %s6
  %s9 = scalar_select 0, %s8, %s6
  %s10 = sshll.u32 %s0, 4
  %s11 = int_to_ptr.vmem [resolvable:$true] %s10
  %13 = dma.vmem_to_smem %s11, 16, [#allocation4], [#allocation3]
  %14 = dma.done [#allocation3], 16
  %15 = sfence
  $region1: #{tpu_custom_call.1} parent=0
    #allocation5 [shape = 'u8[16384]{0}', space=vmem, size = 0x4000, scoped, tag = 'input window, operand 1']
    #allocation6 [shape = 's32[2]{0}', space=sflag, size = 0x8, scoped, tag = 'scoped memory for tpu_custom_call.1']
    #allocation7 [shape = 's32[2]{0}', space=sflag, size = 0x8, scoped, tag = 'scoped memory for tpu_custom_call.1']
    #allocation8 [shape = 'u8[8192]{0}', space=vmem, size = 0x2000, scoped, tag = 'output window, operand 0']
    %16 = vsyncpa [#allocation6], 0
    %s17 = scalar_lea.sflag [#allocation6], 1
    %18 = vsyncpa %s17, 0
    %19 = vsyncpa [#allocation7], 0
    %s20 = scalar_lea.sflag [#allocation7], 1
    %21 = vsyncpa %s20, 0
    loop: start=0, step=1, limit=6
    $region2: #{tpu_custom_call.1} parent=1 // loop_pre_header
      _
    $region3: #{tpu_custom_call.1} parent=1 // loop_header
      %s23 = sphi 0, %s27
      %p24 = scmp.ge.s32.totalorder %s23, 6
      %s30 = sphi 0, %s42
      %s31 = sphi 0, %s38
      %s32 = sphi 0, %s30
      %s33 = sphi 0, %s31
      %s34 = sphi 0, %s32
      %s35 = sphi 0, %s33
      %s47 = sphi 0, %s49
      %s50 = sphi 0, %s47
      %s51 = sphi 0, %s50
      %s67 = sphi 0, %s51
      %s75 = sphi 0, %s77
      %s78 = sphi 0, %s75
      %s79 = sphi 0, %s78
      %s95 = sphi 0, %s79
      %s99 = sphi 0, %s99
      %s101 = sphi 0, %s99
      %s102 = sphi 0, %s101
      %s116 = sphi 0, %s102
      %s120 = sphi 0, %s120
      %s122 = sphi 0, %s120
      %s123 = sphi 0, %s122
      %s137 = sphi 0, %s123
      %s143 = sphi 0, %s145
      %s146 = sphi 0, %s143
      %s147 = sphi 0, %s146
      %s163 = sphi 0, %s147
    $region4: #{tpu_custom_call.1} parent=1 // loop_header_branch
      %26 = sbr.rel (%p24) target = $region8
    $region5: #{tpu_custom_call.1} parent=1 // loop_body
      %s28 = ssub.s32 %s23, 1
      %s29 = ssub.s32 %s23, 2
      %s36 = sadd.s32 1, %s31
      %p37 = scmp.ge.s32.totalorder %s36, 2
      %s38 = scalar_select %p37, 0, %s36
      %s39 = sadd.s32 1, %s30
      %s40 = scalar_select %p37, %s39, %s30
      %p41 = scmp.ge.s32.totalorder %s40, 2
      %s42 = scalar_select %p41, 0, %s40
      %s43 = ssub.s32 %s30, %s42
      %s44 = ssub.s32 %s31, %s38
      %s45 = sor.u32 %s43, %s44
      %p46 = scmp.eq.s32.totalorder %s45, 0
      %s48 = sadd.s32 %s47, 1
      %s49 = scalar_select %p46, %s47, %s48
      %p52 = pneg %p46
      %p53 = scmp.eq.s32.totalorder %s23, 3
      %p54 = por %p52, %p53
      %p55 = scmp.ne.s32.totalorder %s47, %s50
      %p56 = scmp.eq.s32.totalorder %s23, 0
      %p57 = por %p55, %p56
      %p58 = scmp.ne.s32.totalorder %s47, %s50
      %p59 = scmp.eq.s32.totalorder %s28, 3
      %p60 = por %p58, %p59
      %p61 = scmp.ne.s32.totalorder %s50, %s51
      %p62 = scmp.eq.s32.totalorder %s28, 0
      %p63 = por %p61, %p62
      %p64 = scmp.ne.s32.totalorder %s50, %s51
      %p65 = scmp.eq.s32.totalorder %s29, 3
      %p66 = por %p64, %p65
      %p68 = scmp.ne.s32.totalorder %s51, %s67
      %p69 = scmp.eq.s32.totalorder %s29, 0
      %p70 = por %p68, %p69
      %s71 = ssub.s32 %s30, %s42
      %s72 = ssub.s32 %s31, %s38
      %s73 = sor.u32 %s71, %s72
      %p74 = scmp.eq.s32.totalorder %s73, 0
      %s76 = sadd.s32 %s75, 1
      %s77 = scalar_select %p74, %s75, %s76
      %p80 = pneg %p74
      %p81 = scmp.eq.s32.totalorder %s23, 3
      %p82 = por %p80, %p81
      %p83 = scmp.ne.s32.totalorder %s75, %s78
      %p84 = scmp.eq.s32.totalorder %s23, 0
      %p85 = por %p83, %p84
      %p86 = scmp.ne.s32.totalorder %s75, %s78
      %p87 = scmp.eq.s32.totalorder %s28, 3
      %p88 = por %p86, %p87
      %p89 = scmp.ne.s32.totalorder %s78, %s79
      %p90 = scmp.eq.s32.totalorder %s28, 0
      %p91 = por %p89, %p90
      %p92 = scmp.ne.s32.totalorder %s78, %s79
      %p93 = scmp.eq.s32.totalorder %s29, 3
      %p94 = por %p92, %p93
      %p96 = scmp.ne.s32.totalorder %s79, %s95
      %p97 = scmp.eq.s32.totalorder %s29, 0
      %p98 = por %p96, %p97
      %s100 = sadd.s32 %s99, 1
      %p103 = scmp.eq.s32.totalorder %s23, 3
      %p104 = scmp.ne.s32.totalorder %s99, %s101
      %p105 = scmp.eq.s32.totalorder %s23, 0
      %p106 = por %p104, %p105
      %p107 = scmp.ne.s32.totalorder %s99, %s101
      %p108 = scmp.eq.s32.totalorder %s28, 3
      %p109 = por %p107, %p108
      %p110 = scmp.ne.s32.totalorder %s101, %s102
      %p111 = scmp.eq.s32.totalorder %s28, 0
      %p112 = por %p110, %p111
      %p113 = scmp.ne.s32.totalorder %s101, %s102
      %p114 = scmp.eq.s32.totalorder %s29, 3
      %p115 = por %p113, %p114
      %p117 = scmp.ne.s32.totalorder %s102, %s116
      %p118 = scmp.eq.s32.totalorder %s29, 0
      %p119 = por %p117, %p118
      %s121 = sadd.s32 %s120, 1
      %p124 = scmp.eq.s32.totalorder %s23, 3
      %p125 = scmp.ne.s32.totalorder %s120, %s122
      %p126 = scmp.eq.s32.totalorder %s23, 0
      %p127 = por %p125, %p126
      %p128 = scmp.ne.s32.totalorder %s120, %s122
      %p129 = scmp.eq.s32.totalorder %s28, 3
      %p130 = por %p128, %p129
      %p131 = scmp.ne.s32.totalorder %s122, %s123
      %p132 = scmp.eq.s32.totalorder %s28, 0
      %p133 = por %p131, %p132
      %p134 = scmp.ne.s32.totalorder %s122, %s123
      %p135 = scmp.eq.s32.totalorder %s29, 3
      %p136 = por %p134, %p135
      %p138 = scmp.ne.s32.totalorder %s123, %s137
      %p139 = scmp.eq.s32.totalorder %s29, 0
      %p140 = por %p138, %p139
      %s141 = ssub.s32 %s30, %s42
      %p142 = scmp.eq.s32.totalorder %s141, 0
      %s144 = sadd.s32 %s143, 1
      %s145 = scalar_select %p142, %s143, %s144
      %p148 = pneg %p142
      %p149 = scmp.eq.s32.totalorder %s23, 3
      %p150 = por %p148, %p149
      %p151 = scmp.ne.s32.totalorder %s143, %s146
      %p152 = scmp.eq.s32.totalorder %s23, 0
      %p153 = por %p151, %p152
      %p154 = scmp.ne.s32.totalorder %s143, %s146
      %p155 = scmp.eq.s32.totalorder %s28, 3
      %p156 = por %p154, %p155
      %p157 = scmp.ne.s32.totalorder %s146, %s147
      %p158 = scmp.eq.s32.totalorder %s28, 0
      %p159 = por %p157, %p158
      %p160 = scmp.ne.s32.totalorder %s146, %s147
      %p161 = scmp.eq.s32.totalorder %s29, 3
      %p162 = por %p160, %p161
      %p164 = scmp.ne.s32.totalorder %s147, %s163
      %p165 = scmp.eq.s32.totalorder %s29, 0
      %p166 = por %p164, %p165
      %p167 = scmp.le.s32.totalorder 1, %s23
      %p168 = scmp.lt.s32.totalorder %s23, 5
      %p169 = pnand %p167, %p168
      %p170 = pneg %p169
      // Predicated region
      $region9: #{tpu_custom_call.1} parent=5 // pred_check
        _
      $region10: #{tpu_custom_call.1} parent=5 // pred_check_branch
        %172 = sbr.rel (%p169) target = $region12
      $region11: #{tpu_custom_call.1} parent=5 // pred_region
        %s173 = ssub.s32 %s23, 1
        // Predicated region
        $region13: #{tpu_custom_call.1} parent=11 // pred_check
          %p174 = pneg %p112
        $region14: #{tpu_custom_call.1} parent=11 // pred_check_branch
          %176 = sbr.rel (%p174) target = $region16
        $region15: #{tpu_custom_call.1} parent=11 // pred_region
          _
        $region16: #{tpu_custom_call.1} parent=11 // pred_fallthru
          _
        // Predicated region
        $region17: #{tpu_custom_call.1} parent=11 // pred_check
          %p177 = pneg %p133
        $region18: #{tpu_custom_call.1} parent=11 // pred_check_branch
          %179 = sbr.rel (%p177) target = $region20
        $region19: #{tpu_custom_call.1} parent=11 // pred_region
          _
        $region20: #{tpu_custom_call.1} parent=11 // pred_fallthru
          _
      $region12: #{tpu_custom_call.1} parent=5 // pred_fallthru
        _
      %p180 = scmp.lt.s32.totalorder %s23, 4
      // Predicated region
      $region21: #{tpu_custom_call.1} parent=5 // pred_check
        %p181 = pneg %p180
      $region22: #{tpu_custom_call.1} parent=5 // pred_check_branch
        %183 = sbr.rel (%p181) target = $region24
      $region23: #{tpu_custom_call.1} parent=5 // pred_region
        // Predicated region
        $region25: #{tpu_custom_call.1} parent=23 // pred_check
          %p184 = pneg %p57
        $region26: #{tpu_custom_call.1} parent=23 // pred_check_branch
          %186 = sbr.rel (%p184) target = $region28
        $region27: #{tpu_custom_call.1} parent=23 // pred_region
          %s187 = sand.u32 %s47, 1
          %s188 = scalar_lea.sflag [#allocation6], %s187
          %s189 = sand.u32 %s47, 1
          %s190 = smul.addr %s189, 16
          %s191 = scalar_lea.vmem [#allocation5], %s190
          %s192 = smul.u32 2, %s31
          %s193 = ssub.s32 3, %s192
          %p194 = scmp.lt.s32.totalorder %s193, 2
          %s195 = scalar_select %p194, %s193, 2
          %s196 = smul.u32 128, %s195
          %s198 = ssub.s32 256, %s196
          %199 = vsyncadd %s188, %s198
          %p200 = scmp.ne.s32.totalorder 0, %s196
          %s201 = smul.addr %s30, 3
          %s202 = sadd.s32 %s192, %s201
          %s203 = smul.addr %s202, 128
          %s204 = scalar_lea.hbm %s1, %s203
          %s205 = smul.u32 8, %s195
          %s206 = sshll.u32 %s191, 4
          %s207 = int_to_ptr.vmem [resolvable:$true] %s206
          %s208 = sshll.u32 %s205, 4
          %212 = dma.hbm_to_vmem [thread:$0]  (%p200), %s204, %s208, %s207, %s188, 128, 128, 8
        $region28: #{tpu_custom_call.1} parent=23 // pred_fallthru
          _
        // Predicated region
        $region29: #{tpu_custom_call.1} parent=23 // pred_check
          %p213 = pneg %p85
        $region30: #{tpu_custom_call.1} parent=23 // pred_check_branch
          %215 = sbr.rel (%p213) target = $region32
        $region31: #{tpu_custom_call.1} parent=23 // pred_region
          %s216 = smul.u32 2, %s31
          %s217 = ssub.s32 3, %s216
          %p218 = scmp.lt.s32.totalorder %s217, 2
          %s219 = scalar_select %p218, %s217, 2
          %s220 = smul.u32 128, %s219
          %p221 = scmp.lt.s32.totalorder %s30, 1
          %s222 = scalar_select %p221, %s30, 1
          %p223 = scmp.lt.s32.totalorder %s216, 2
          %s224 = scalar_select %p223, %s216, 2
          %s225 = smul.addr %s222, 3
          %s226 = sadd.s32 %s224, %s225
          %s227 = smul.addr %s226, 8
          %s228 = scalar_lea.vmem %s2, %s227
          %s229 = smul.u32 2, %s31
          %s230 = ssub.s32 3, %s229
          %p231 = scmp.lt.s32.totalorder %s230, 2
          %s232 = scalar_select %p231, %s230, 2
          %s233 = smul.u32 128, %s232
        $region32: #{tpu_custom_call.1} parent=23 // pred_fallthru
          _
      $region24: #{tpu_custom_call.1} parent=5 // pred_fallthru
        _
      %p234 = scmp.le.s32.totalorder 1, %s23
      %p235 = scmp.lt.s32.totalorder %s23, 5
      %p236 = pnand %p234, %p235
      %p237 = pneg %p236
      // Predicated region
      $region33: #{tpu_custom_call.1} parent=5 // pred_check
        _
      $region34: #{tpu_custom_call.1} parent=5 // pred_check_branch
        %239 = sbr.rel (%p236) target = $region36
      $region35: #{tpu_custom_call.1} parent=5 // pred_region
        %s240 = ssub.s32 %s23, 1
        %s241 = sand.u32 %s50, 1
        %s242 = scalar_lea.sflag [#allocation6], %s241
        %s243 = sand.u32 %s50, 1
        %s244 = smul.addr %s243, 16
        %s245 = scalar_lea.vmem [#allocation5], %s244
        // Predicated region
        $region37: #{tpu_custom_call.1} parent=35 // pred_check
          %p246 = pneg %p63
        $region38: #{tpu_custom_call.1} parent=35 // pred_check_branch
          %248 = sbr.rel (%p246) target = $region40
        $region39: #{tpu_custom_call.1} parent=35 // pred_region
          %249 = dma.done %s242, 256
        $region40: #{tpu_custom_call.1} parent=35 // pred_fallthru
          _
        %s250 = sand.u32 %s50, 1
        %s251 = scalar_lea.sflag [#allocation6], %s250
        %s252 = sand.u32 %s50, 1
        %s253 = smul.addr %s252, 16
        %s254 = scalar_lea.vmem [#allocation5], %s253
        %p255 = pneg %p63
        %p256 = pneg %p60
        %s257 = smul.u32 2, %s33
        %s258 = ssub.s32 3, %s257
        %p259 = scmp.lt.s32.totalorder %s258, 2
        %s260 = scalar_select %p259, %s258, 2
        %s261 = smul.u32 128, %s260
        %p262 = scmp.lt.s32.totalorder %s32, 1
        %s263 = scalar_select %p262, %s32, 1
        %p264 = scmp.lt.s32.totalorder %s257, 2
        %s265 = scalar_select %p264, %s257, 2
        %s266 = smul.addr %s263, 3
        %s267 = sadd.s32 %s265, %s266
        %s268 = smul.addr %s267, 8
        %s269 = scalar_lea.vmem %s2, %s268
        %p270 = pneg %p91
        %p271 = pneg %p88
        %p272 = pneg %p112
        %p273 = pneg %p109
        %p274 = pneg %p133
        %p275 = pneg %p130
        %p276 = pneg %p159
        %p277 = pneg %p156
        %s278 = sand.u32 %s146, 1
        %s279 = scalar_lea.sflag [#allocation7], %s278
        %s280 = sand.u32 %s146, 1
        %s281 = smul.addr %s280, 8
        %s282 = scalar_lea.vmem [#allocation8], %s281
        %s283 = smul.u32 2, %s33
        %s284 = ssub.s32 3, %s283
        %p285 = scmp.lt.s32.totalorder %s284, 2
        %s286 = scalar_select %p285, %s284, 2
        %s287 = smul.u32 128, %s286
        %s288 = smul.u32 2, %s33
        %s289 = ssub.s32 3, %s288
        %p290 = scmp.lt.s32.totalorder %s289, 2
        %s291 = scalar_select %p290, %s289, 2
        %s292 = smul.u32 128, %s291
        %p293 = scmp.lt.s32.totalorder %s32, 1
        %s294 = scalar_select %p293, %s32, 1
        %p295 = scmp.lt.s32.totalorder %s288, 2
        %s296 = scalar_select %p295, %s288, 2
        %s297 = smul.addr %s294, 3
        %s298 = sadd.s32 %s296, %s297
        %s299 = smul.addr %s298, 8
        %s300 = scalar_lea.vmem %s2, %s299
        %s301 = smul.u32 2, %s33
        %s302 = ssub.s32 3, %s301
        %p303 = scmp.lt.s32.totalorder %s302, 2
        %s304 = scalar_select %p303, %s302, 2
        %s305 = smul.u32 128, %s304
        %s306 = sld [smem:[#allocation4 + %s32]]
        %s307 = scvt.s32.f32 %s306
        %p308 = scmp.eq.s32.totalorder %s33, 0
        // Predicated region
        $region41: #{tpu_custom_call.1} parent=35 // pred_check
          %p309 = pneg %p308
        $region42: #{tpu_custom_call.1} parent=35 // pred_check_branch
          %311 = sbr.rel (%p309) target = $region44
        $region43: #{tpu_custom_call.1} parent=35 // pred_region
          %vm312 = vcmask 57344
          %313 = vst.msk [vmem:[#allocation2] sm:$0x1] %vm312, 0.0
        $region44: #{tpu_custom_call.1} parent=35 // pred_fallthru
          _
        %v314 = vld [vmem:[%s245] sm:$0xff]
        %v315 = vld [vmem:[%s245 + $0x8] sm:$0xff]
        %v316 = vld [vmem:[%s3] sm:$0xff]
        %v317 = vld [vmem:[%s3 + $0x8] sm:$0xff]
        %v318 = vld [vmem:[%s3 + $0x10] sm:$0xff]
        %v319 = vld [vmem:[%s3 + $0x18] sm:$0xff]
        %v320 = vld [vmem:[%s3 + $0x20] sm:$0xff]
        %v321 = vld [vmem:[%s3 + $0x28] sm:$0xff]
        %v322 = vld [vmem:[%s3 + $0x30] sm:$0xff]
        %v323 = vld [vmem:[%s3 + $0x38] sm:$0xff]
        %v324 = vld [vmem:[%s4] sm:$0x3]
        %v326 = vlaneseq
        %v327 = vshrl.u32 %v326, 7
        %v328 = vsub.s32 0, %v327
        %v329 = vrot.slane %v324, %v328
        %v330 = vlaneseq
        %v331 = vshrl.u32 %v330, 7
        %v332 = vsub.s32 1, %v331
        %v333 = vrot.slane %v324, %v332
        %vm336 = vcmask 261120
        %v338 = vsel %vm336, %v314, 0
        %v341 = vsel %vm336, %v315, 0
        %343 = vmatprep.subr.mxu0 %v317
        %344 = vmatpush1.msra.mxu0 %v316
        %345 = vmatprep.subr.mxu0 %v319
        %346 = vmatpush1.msra.mxu0 %v318
        %347 = vmatprep.subr.mxu0 %v321
        %348 = vmatpush1.msra.mxu0 %v320
        %349 = vmatprep.subr.mxu0 %v323
        %350 = vmatpush1.msra.mxu0 %v322
        %351 = vmatprep.subr.mxu0 0.0
        %352 = vmatpush1.msra.mxu0 0.0
        %353 = vmatprep.subr.mxu0 0.0
        %354 = vmatpush1.msra.mxu0 0.0
        %355 = vmatprep.subr.mxu0 0.0
        %356 = vmatpush1.msra.mxu0 0.0
        %357 = vmatprep.subr.mxu0 0.0
        %358 = vmatpush1.msra.mxu0 0.0
        %359 = vmatprep.subr.mxu0 0.0
        %360 = vmatpush1.msra.mxu0 0.0
        %361 = vmatprep.subr.mxu0 0.0
        %362 = vmatpush1.msra.mxu0 0.0
        %363 = vmatprep.subr.mxu0 0.0
        %364 = vmatpush1.msra.mxu0 0.0
        %365 = vmatprep.subr.mxu0 0.0
        %366 = vmatpush1.msra.mxu0 0.0
        %367 = vmatprep.subr.mxu0 0.0
        %368 = vmatpush1.msra.mxu0 0.0
        %369 = vmatprep.subr.mxu0 0.0
        %370 = vmatpush1.msra.mxu0 0.0
        %371 = vmatprep.subr.mxu0 0.0
        %372 = vmatpush1.msra.mxu0 0.0
        %373 = vmatprep.subr.mxu0 0.0
        %374 = vmatpush1.msra.mxu0 0.0
        %375 = vmatprep.subr.mxu0 0.0
        %376 = vmatpush1.msra.mxu0 0.0
        %377 = vmatprep.subr.mxu0 0.0
        %378 = vmatpush1.msra.mxu0 0.0
        %379 = vmatprep.subr.mxu0 0.0
        %380 = vmatpush1.msra.mxu0 0.0
        %381 = vmatprep.subr.mxu0 0.0
        %382 = vmatpush1.msra.mxu0 0.0
        %383 = vmatprep.subr.mxu0 0.0
        %384 = vmatpush1.msra.mxu0 0.0
        %385 = vmatprep.subr.mxu0 0.0
        %386 = vmatpush1.msra.mxu0 0.0
        %387 = vmatprep.subr.mxu0 0.0
        %388 = vmatpush1.msra.mxu0 0.0
        %389 = vmatprep.subr.mxu0 0.0
        %390 = vmatpush1.msra.mxu0 0.0
        %391 = vmatprep.subr.mxu0 0.0
        %392 = vmatpush1.msra.mxu0 0.0
        %393 = vmatprep.subr.mxu0 0.0
        %394 = vmatpush1.msra.mxu0 0.0
        %395 = vmatprep.subr.mxu0 0.0
        %396 = vmatpush1.msra.mxu0 0.0
        %397 = vmatprep.subr.mxu0 0.0
        %398 = vmatpush1.msra.mxu0 0.0
        %399 = vmatprep.subr.mxu0 0.0
        %400 = vmatpush1.msra.mxu0 0.0
        %401 = vmatprep.subr.mxu0 0.0
        %402 = vmatpush1.msra.mxu0 0.0
        %403 = vmatprep.subr.mxu0 0.0
        %404 = vmatpush1.msra.mxu0 0.0
        %405 = vmatprep.subr.mxu0 0.0
        %406 = vmatpush1.msra.mxu0 0.0
        %407 = vmatprep.mubr.f32.mxu0 0.0
        %408 = vmatmul.mubr.f32.gmra.mrb[0].mxu0 %v338
        %v409 = vpop.f32.mrb[0].mxu0
        %v410 = vadd.f32 %v329, %v409
        %v411 = vpop.f32.mrb[0].mxu0
        %v412 = vadd.f32 %v333, %v411
        %413 = vmatprep.mubr.f32.mxu0 0.0
        %414 = vmatmul.mubr.f32.gmra.mrb[0].mxu0 %v341
        %v415 = vpop.f32.mrb[0].mxu0
        %v416 = vadd.f32 %v329, %v415
        %v417 = vpop.f32.mrb[0].mxu0
        %v418 = vadd.f32 %v333, %v417
        %419 = vdwg.mxu0
        %v420 = vld [vmem:[%s300] sm:$0xff]
        %v421 = vld [vmem:[%s300 + $0x8] sm:$0xff]
        %v422 = vcvt.f32.s32.to.zero.pseudo %v420
        %v423 = vcvt.f32.s32.to.zero.pseudo %v421
        %v424 = vlaneseq
        %v425 = vshrl.u32 %v424, 7
        %v426 = vadd.s32 %v425, 8
        %s427 = smul.u32 %s33, 16
        %v428 = vstv %s427
        %v429 = vadd.s32 %v425, %v428
        %v430 = vadd.s32 %v426, %v428
        %vm431 = vcmp.lt.s32.totalorder %v429, 24
        %vm432 = vcmp.lt.s32.totalorder %v430, 24
        %v433 = vsel %vm431, %v420, 0.0
        %v434 = vsel %vm432, %v421, 0.0
        %vm435 = vcmp.ne.s32.totalorder %v422, 60
        %vm436 = vcmp.ne.s32.totalorder %v423, 60
        %v437 = vsel %vm435, 1, 0
        %v438 = vsel %vm436, 1, 0
        %v439 = vcvt.s32.f32 %v437
        %v440 = vcvt.s32.f32 %v438
        %443 = vrot.lane.b32.xlu0 %v439, 1
        %v444 = vpop.permute.xlu0 %443
        %445 = vrot.lane.b32.xlu0 %v440, 1
        %v446 = vpop.permute.xlu0 %445
        %v449 = vmul.f32 %v433, %v444
        %v450 = vmul.f32 %v434, %v446
        %451 = vmax.xlane.f32.xlu0 %v410
        %v452 = vpop.xlane.xlu0 %451
        %453 = vmax.xlane.f32.xlu0 %v416
        %v454 = vpop.xlane.xlu0 %453
        %v455 = vsub.f32 %v410, %v452
        %v456 = vsub.f32 %v416, %v454
        %v457 = vmul.f32 %v455, 1.442695
        %v458 = vpow.pop %v457
        %v459 = vmul.f32 %v456, 1.442695
        %v460 = vpow.pop %v459
        %461 = vadd.xlane.f32.xlu0 %v458
        %v462 = vpop.xlane.xlu0 %461
        %463 = vadd.xlane.f32.xlu0 %v460
        %v464 = vpop.xlane.xlu0 %463
        %v465 = vlog2.pop %v462
        %v466 = vmul.f32 %v465, 0.6931472
        %v467 = vlog2.pop %v464
        %v468 = vmul.f32 %v467, 0.6931472
        %v469 = vlaneseq
        %v470 = vand.u32 %v469, 127
        %471 = vset.pattern.permute.xlu0 0
        %472 = vperm.xlu0 %471, %v422
        %v473 = vpop.permute.xlu0 %472
        %474 = vset.pattern.permute.xlu0 0
        %475 = vperm.xlu0 %474, %v423
        %v476 = vpop.permute.xlu0 %475
        %vm477 = vcmp.eq.s32.totalorder %v470, %v473
        %vm478 = vcmp.eq.s32.totalorder %v470, %v476
        %v479 = vsel %vm477, 1, 0
        %v480 = vsel %vm478, 1, 0
        %v481 = vcvt.s32.f32 %v479
        %v482 = vcvt.s32.f32 %v480
        %v483 = vmul.f32 %v455, %v481
        %v484 = vmul.f32 %v456, %v482
        %485 = vadd.xlane.f32.xlu0 %v483
        %v486 = vpop.xlane.xlu0 %485
        %487 = vadd.xlane.f32.xlu0 %v484
        %v488 = vpop.xlane.xlu0 %487
        %v489 = vsub.f32 %v486, %v466
        %v490 = vsub.f32 %v488, %v468
        %v491 = vsel %vm431, %v489, 0.0
        %v492 = vsel %vm432, %v490, 0.0
        %v493 = vmul.f32 %v491, %v433
        %v494 = vmul.f32 %v492, %v434
        %vm495 = vcmask 23568
        %v496 = vsel %vm495, %v493, 0.0
        %v497 = vsel %vm495, %v494, 0.0
        %v498 = vadd.f32 %v496, %v497
        %v499 = vrot.slane %v498, 4
        %v500 = vadd.f32 %v498, %v499
        %v501 = vrot.slane %v500, 2
        %v502 = vadd.f32 %v500, %v501
        %v503 = vrot.slane %v502, 1
        %v504 = vadd.f32 %v502, %v503
        %v505 = vmul.f32 %v458, %v455
        %v506 = vmul.f32 %v460, %v456
        %507 = vadd.xlane.f32.xlu0 %v505
        %v508 = vpop.xlane.xlu0 %507
        %509 = vadd.xlane.f32.xlu0 %v506
        %v510 = vpop.xlane.xlu0 %509
        %v511 = vrcp.pop %v462
        %v512 = vmul.f32 %v508, %v511
        %v513 = vrcp.pop %v464
        %v514 = vmul.f32 %v510, %v513
        %v515 = vsub.f32 %v466, %v512
        %v516 = vsub.f32 %v468, %v514
        %v517 = vsel %vm431, %v515, 0.0
        %v518 = vsel %vm432, %v516, 0.0
        %v519 = vmul.f32 %v517, %v433
        %v520 = vmul.f32 %v518, %v434
        %v521 = vsel %vm495, %v519, 0.0
        %v522 = vsel %vm495, %v520, 0.0
        %v523 = vadd.f32 %v521, %v522
        %v524 = vrot.slane %v523, 4
        %v525 = vadd.f32 %v523, %v524
        %v526 = vrot.slane %v525, 2
        %v527 = vadd.f32 %v525, %v526
        %v528 = vrot.slane %v527, 1
        %v529 = vadd.f32 %v527, %v528
        %530 = vmax.xlane.f32.xlu0 %v412
        %v531 = vpop.xlane.xlu0 %530
        %532 = vmax.xlane.f32.xlu0 %v418
        %v533 = vpop.xlane.xlu0 %532
        %v534 = vsub.f32 %v412, %v531
        %v535 = vsub.f32 %v418, %v533
        %v536 = vmul.f32 %v534, 1.442695
        %v537 = vpow.pop %v536
        %v538 = vmul.f32 %v535, 1.442695
        %v539 = vpow.pop %v538
        %540 = vadd.xlane.f32.xlu0 %v537
        %v541 = vpop.xlane.xlu0 %540
        %542 = vadd.xlane.f32.xlu0 %v539
        %v543 = vpop.xlane.xlu0 %542
        %v544 = vlog2.pop %v541
        %v545 = vmul.f32 %v544, 0.6931472
        %v546 = vlog2.pop %v543
        %v547 = vmul.f32 %v546, 0.6931472
        %548 = vset.pattern.permute.xlu0 1
        %549 = vperm.xlu0 %548, %v422
        %v550 = vpop.permute.xlu0 %549
        %551 = vset.pattern.permute.xlu0 1
        %552 = vperm.xlu0 %551, %v423
        %v553 = vpop.permute.xlu0 %552
        %vm554 = vcmp.eq.s32.totalorder %v470, %v550
        %vm555 = vcmp.eq.s32.totalorder %v470, %v553
        %v556 = vsel %vm554, 1, 0
        %v557 = vsel %vm555, 1, 0
        %v558 = vcvt.s32.f32 %v556
        %v559 = vcvt.s32.f32 %v557
        %v560 = vmul.f32 %v534, %v558
        %v561 = vmul.f32 %v535, %v559
        %562 = vadd.xlane.f32.xlu0 %v560
        %v563 = vpop.xlane.xlu0 %562
        %564 = vadd.xlane.f32.xlu0 %v561
        %v565 = vpop.xlane.xlu0 %564
        %v566 = vsub.f32 %v563, %v545
        %v567 = vsub.f32 %v565, %v547
        %v568 = vsel %vm431, %v566, 0.0
        %v569 = vsel %vm432, %v567, 0.0
        %v570 = vmul.f32 %v568, %v449
        %v571 = vmul.f32 %v569, %v450
        %v572 = vsel %vm495, %v570, 0.0
        %v573 = vsel %vm495, %v571, 0.0
        %v574 = vadd.f32 %v572, %v573
        %v575 = vrot.slane %v574, 4
        %v576 = vadd.f32 %v574, %v575
        %v577 = vrot.slane %v576, 2
        %v578 = vadd.f32 %v576, %v577
        %v579 = vrot.slane %v578, 1
        %v580 = vadd.f32 %v578, %v579
        %v581 = vmul.f32 %v537, %v534
        %v582 = vmul.f32 %v539, %v535
        %583 = vadd.xlane.f32.xlu0 %v581
        %v584 = vpop.xlane.xlu0 %583
        %585 = vadd.xlane.f32.xlu0 %v582
        %v586 = vpop.xlane.xlu0 %585
        %v587 = vrcp.pop %v541
        %v588 = vmul.f32 %v584, %v587
        %v589 = vrcp.pop %v543
        %v590 = vmul.f32 %v586, %v589
        %v591 = vsub.f32 %v545, %v588
        %v592 = vsub.f32 %v547, %v590
        %v593 = vsel %vm431, %v591, 0.0
        %v594 = vsel %vm432, %v592, 0.0
        %v595 = vmul.f32 %v593, %v449
        %v596 = vmul.f32 %v594, %v450
        %v597 = vsel %vm495, %v595, 0.0
        %v598 = vsel %vm495, %v596, 0.0
        %v599 = vadd.f32 %v597, %v598
        %v600 = vrot.slane %v599, 4
        %v601 = vadd.f32 %v599, %v600
        %v602 = vrot.slane %v601, 2
        %v603 = vadd.f32 %v601, %v602
        %v604 = vrot.slane %v603, 1
        %v605 = vadd.f32 %v603, %v604
        %v606 = vsel %vm495, %v433, 0.0
        %v607 = vsel %vm495, %v434, 0.0
        %v608 = vadd.f32 %v606, %v607
        %v609 = vrot.slane %v608, 4
        %v610 = vadd.f32 %v608, %v609
        %v611 = vrot.slane %v610, 2
        %v612 = vadd.f32 %v610, %v611
        %v613 = vrot.slane %v612, 1
        %v614 = vadd.f32 %v612, %v613
        %v615 = vsel %vm495, %v449, 0.0
        %v616 = vsel %vm495, %v450, 0.0
        %v617 = vadd.f32 %v615, %v616
        %v618 = vrot.slane %v617, 4
        %v619 = vadd.f32 %v617, %v618
        %v620 = vrot.slane %v619, 2
        %v621 = vadd.f32 %v619, %v620
        %v622 = vrot.slane %v621, 1
        %v623 = vadd.f32 %v621, %v622
        %vm624 = vcmp.eq.s32.totalorder %v470, 0
        %626 = vset.pattern.permute.xlu0 2
        %627 = vperm.xlu0 %626, %v504
        %v628 = vpop.permute.xlu0 %627
        %v630 = vsel %vm624, %v628, 0.0
        %vm631 = vcmp.eq.s32.totalorder %v470, 1
        %633 = vset.pattern.permute.xlu0 2
        %634 = vperm.xlu0 %633, %v580
        %v635 = vpop.permute.xlu0 %634
        %v637 = vsel %vm631, %v635, 0.0
        %v638 = vadd.f32 %v630, %v637
        %vm639 = vcmp.eq.s32.totalorder %v470, 2
        %641 = vset.pattern.permute.xlu0 2
        %642 = vperm.xlu0 %641, %v529
        %v643 = vpop.permute.xlu0 %642
        %v645 = vsel %vm639, %v643, 0.0
        %v646 = vadd.f32 %v638, %v645
        %vm647 = vcmp.eq.s32.totalorder %v470, 3
        %649 = vset.pattern.permute.xlu0 2
        %650 = vperm.xlu0 %649, %v605
        %v651 = vpop.permute.xlu0 %650
        %v653 = vsel %vm647, %v651, 0.0
        %v654 = vadd.f32 %v646, %v653
        %vm655 = vcmp.eq.s32.totalorder %v470, 4
        %657 = vset.pattern.permute.xlu0 2
        %658 = vperm.xlu0 %657, %v614
        %v659 = vpop.permute.xlu0 %658
        %v661 = vsel %vm655, %v659, 0.0
        %v662 = vadd.f32 %v654, %v661
        %vm663 = vcmp.eq.s32.totalorder %v470, 5
        %665 = vset.pattern.permute.xlu0 2
        %666 = vperm.xlu0 %665, %v623
        %v667 = vpop.permute.xlu0 %666
        %v669 = vsel %vm663, %v667, 0.0
        %v670 = vadd.f32 %v662, %v669
        %v671 = vld [vmem:[#allocation2] sm:$0x1]
        %v672 = vadd.f32 %v671, %v670
        %vm673 = vcmask 57344
        %674 = vst.msk [vmem:[#allocation2] sm:$0x1] %vm673, %v672
        %p675 = scmp.eq.s32.totalorder %s33, 1
        // Predicated region
        $region45: #{tpu_custom_call.1} parent=35 // pred_check
          %p676 = pneg %p675
        $region46: #{tpu_custom_call.1} parent=35 // pred_check_branch
          %678 = sbr.rel (%p676) target = $region48
        $region47: #{tpu_custom_call.1} parent=35 // pred_region
          %v679 = vld [vmem:[#allocation2] sm:$0x1]
          %v680 = vsub.f32 0.0, %v679
          %v681 = vstv %s307
          %v682 = vmul.f32 %v680, %v681
          %684 = vrot.lane.b32.xlu0 %v682, 127
          %v685 = vpop.permute.xlu0 %684
          %v687 = vadd.f32 %v682, %v685
          %689 = vrot.lane.b32.xlu0 %v679, 127
          %v690 = vpop.permute.xlu0 %689
          %v692 = vadd.f32 %v679, %v690
          %v693 = vmul.f32 %v692, %v681
          %v695 = vlaneseq
          %v696 = vshrl.u32 %v695, 7
          %v697 = vsub.s32 0, %v696
          %v698 = vrot.slane %v687, %v697
          %699 = vset.pattern.permute.xlu0 0
          %700 = vperm.xlu0 %699, %v698
          %v701 = vpop.permute.xlu0 %700
          %v703 = vsel %vm624, %v701, 0.0
          %v704 = vlaneseq
          %v705 = vshrl.u32 %v704, 7
          %v706 = vsub.s32 0, %v705
          %v707 = vrot.slane %v682, %v706
          %708 = vset.pattern.permute.xlu0 0
          %709 = vperm.xlu0 %708, %v707
          %v710 = vpop.permute.xlu0 %709
          %v712 = vsel %vm631, %v710, 0.0
          %v713 = vadd.f32 %v703, %v712
          %714 = vset.pattern.permute.xlu0 1
          %715 = vperm.xlu0 %714, %v707
          %v716 = vpop.permute.xlu0 %715
          %v718 = vsel %vm639, %v716, 0.0
          %v719 = vadd.f32 %v713, %v718
          %v721 = vlaneseq
          %v722 = vshrl.u32 %v721, 7
          %v723 = vsub.s32 0, %v722
          %v724 = vrot.slane %v693, %v723
          %725 = vset.pattern.permute.xlu0 2
          %726 = vperm.xlu0 %725, %v724
          %v727 = vpop.permute.xlu0 %726
          %v729 = vsel %vm647, %v727, 0.0
          %v730 = vadd.f32 %v719, %v729
          %v731 = vsel %vm655, %v701, 0.0
          %v732 = vadd.f32 %v730, %v731
          %733 = vst [vmem:[%s282] sm:$0xff] %v732
        $region48: #{tpu_custom_call.1} parent=35 // pred_fallthru
          _
        %s734 = sand.u32 %s146, 1
        %s735 = scalar_lea.sflag [#allocation7], %s734
        %s736 = sand.u32 %s146, 1
        %s737 = smul.addr %s736, 8
        %s738 = scalar_lea.vmem [#allocation8], %s737
        // Predicated region
        $region49: #{tpu_custom_call.1} parent=35 // pred_check
          %p739 = pneg %p156
        $region50: #{tpu_custom_call.1} parent=35 // pred_check_branch
          %741 = sbr.rel (%p739) target = $region52
        $region51: #{tpu_custom_call.1} parent=35 // pred_region
          %s743 = ssub.s32 128, 128
          %744 = vsyncadd %s735, %s743
          %s745 = smul.addr %s32, 128
          %s746 = scalar_lea.hbm %s5, %s745
          %s748 = sshll.u32 %s738, 4
          %s749 = int_to_ptr.vmem [resolvable:$true] %s748
          %751 = dma.vmem_to_hbm [thread:$0]  %s749, 128, %s746, %s735
        $region52: #{tpu_custom_call.1} parent=35 // pred_fallthru
          _
      $region36: #{tpu_custom_call.1} parent=5 // pred_fallthru
        _
      %p752 = scmp.le.s32.totalorder 2, %s23
      // Predicated region
      $region53: #{tpu_custom_call.1} parent=5 // pred_check
        %p753 = pneg %p752
      $region54: #{tpu_custom_call.1} parent=5 // pred_check_branch
        %755 = sbr.rel (%p753) target = $region56
      $region55: #{tpu_custom_call.1} parent=5 // pred_region
        %s756 = ssub.s32 %s23, 2
        // Predicated region
        $region57: #{tpu_custom_call.1} parent=55 // pred_check
          %p757 = pneg %p162
        $region58: #{tpu_custom_call.1} parent=55 // pred_check_branch
          %759 = sbr.rel (%p757) target = $region60
        $region59: #{tpu_custom_call.1} parent=55 // pred_region
          %s760 = sand.u32 %s147, 1
          %s761 = scalar_lea.sflag [#allocation7], %s760
          %s762 = sand.u32 %s147, 1
          %s763 = smul.addr %s762, 8
          %s764 = scalar_lea.vmem [#allocation8], %s763
          %765 = dma.done %s761, 128
        $region60: #{tpu_custom_call.1} parent=55 // pred_fallthru
          _
      $region56: #{tpu_custom_call.1} parent=5 // pred_fallthru
        _
    $region6: #{tpu_custom_call.1} parent=1 // loop_footer
      %s27 = sadd.s32 1, %s23
    $region7: #{tpu_custom_call.1} parent=1 // loop_footer_branch
      %22 = sbr.rel target = $region3
    $region8: #{tpu_custom_call.1} parent=1 // loop_exit
      _
    %766 = vsyncpa [#allocation6], 1
    %s767 = scalar_lea.sflag [#allocation6], 1
    %768 = vsyncpa %s767, 1
    %769 = vsyncpa [#allocation7], 1
    %s770 = scalar_lea.sflag [#allocation7], 1
    %771 = vsyncpa %s770, 1

</llo_original>
